<compile_context>
chip_gen: v7x
topology: tpu7x:2x2x1
jax: 0.10.0
libtpu: 0.0.40
codegen_flags: <defaults>
</compile_context>

<pallas_src>
import functools

import jax
import jax.numpy as jnp
from jax.experimental import pallas as pl
from jax.experimental.pallas import tpu as pltpu


def _round_up(x, m):
    return (x + m - 1) // m * m


def _detect_bf16_eup():
    """bf16 VPU/EUP exists on v6e/v7x; keep f32 epilogues on v5e and older."""
    try:
        kind = jax.devices()[0].device_kind.lower()
    except Exception:
        return False
    if "tpu" not in kind:
        return False
    for old in ("v2", "v3", "v4", "v5"):
        if old in kind:
            return False
    return True


_EPILOGUE_BF16 = _detect_bf16_eup()


def _silu(r):
    """SiLU; bf16 on chips with a bf16 EUP, f32 otherwise."""
    if _EPILOGUE_BF16:
        rb = r.astype(jnp.bfloat16)
        return rb * jax.nn.sigmoid(rb)
    return r * jax.nn.sigmoid(r)


# --------------------------------------------------------------------------
# Matmul kernel: 1x1 convs (expand / SE-scaled projection / head) + classifier.
# Single K block and single N block (B0 channel dims always fit VMEM), grid is
# (B, Mt).  Optional per-sample channel scale (SE gate), residual add, and a
# fused global-average-pool epilogue (head conv).
# --------------------------------------------------------------------------

def _mm_kernel(*refs, act, has_scale, has_res, gap):
    i = 0
    scale_ref = None
    res_ref = None
    if has_scale:
        scale_ref = refs[i]
        i += 1
    a_ref, b_ref, bias_ref = refs[i], refs[i + 1], refs[i + 2]
    i += 3
    if has_res:
        res_ref = refs[i]
        i += 1
    o_ref = refs[i]

    a = a_ref[0]                                    # (bm, K) bf16
    if has_scale:
        a = a * scale_ref[0]                        # (1, K) bf16 broadcast
    r = jnp.dot(a, b_ref[...], preferred_element_type=jnp.float32)
    r = r + bias_ref[...]                           # (bm, N) f32
    if act == "silu":
        r = _silu(r)
    elif act == "relu":
        r = jnp.maximum(r, 0.0)
    elif act == "sigmoid":
        r = jax.nn.sigmoid(r)
    if has_res:
        r = r + res_ref[0].astype(jnp.float32)
    if gap:
        g = jnp.mean(r.astype(jnp.float32), axis=0, keepdims=True)   # (1, N)
        o_ref[0] = g.astype(o_ref.dtype)
    else:
        o_ref[0] = r.astype(o_ref.dtype)


def _pick_bm(M, N, gap):
    if gap or M <= 1024:
        return M
    bm = 1024
    while bm > 256 and bm * N * 4 > (2 << 20):      # keep f32 acc ~<= 2 MB
        bm //= 2
    return bm


def _matmul_bias_act(a, b, bias, scale=None, residual=None, act="none",
                     gap=False, out_dtype=jnp.bfloat16):
    """a: (B, M, K); b: (K, N); bias: (N,); scale: (B, 1, K) or None;
    residual: (B, M, N) or None.  Traced inside the caller's jit."""
    B, M, K = a.shape
    N = b.shape[1]
    a = a.astype(jnp.bfloat16)
    b = b.astype(jnp.bfloat16)
    bias2 = bias.reshape(1, N).astype(jnp.float32)

    bm = _pick_bm(M, N, gap)
    mt = pl.cdiv(M, bm)

    in_specs = []
    args = []
    if scale is not None:
        in_specs.append(pl.BlockSpec((1, 1, K), lambda n, i: (n, 0, 0)))
        args.append(scale.astype(jnp.bfloat16))
    in_specs += [
        pl.BlockSpec((1, bm, K), lambda n, i: (n, i, 0)),
        pl.BlockSpec((K, N), lambda n, i: (0, 0)),     # resident weights
        pl.BlockSpec((1, N), lambda n, i: (0, 0)),     # resident bias
    ]
    args += [a, b, bias2]
    if residual is not None:
        in_specs.append(pl.BlockSpec((1, bm, N), lambda n, i: (n, i, 0)))
        args.append(residual.astype(jnp.bfloat16))

    if gap:
        out_shape = jax.ShapeDtypeStruct((B, 1, N), out_dtype)
        out_spec = pl.BlockSpec((1, 1, N), lambda n, i: (n, 0, 0))
    else:
        out_shape = jax.ShapeDtypeStruct((B, M, N), out_dtype)
        out_spec = pl.BlockSpec((1, bm, N), lambda n, i: (n, i, 0))

    return pl.pallas_call(
        functools.partial(_mm_kernel, act=act,
                          has_scale=scale is not None,
                          has_res=residual is not None, gap=gap),
        out_shape=out_shape,
        grid=(B, mt),
        in_specs=in_specs,
        out_specs=out_spec,
        compiler_params=pltpu.CompilerParams(
            dimension_semantics=("parallel", "parallel")),
    )(*args)


@functools.partial(jax.jit, static_argnames=("act",))
def conv1x1_bn_act(x, w, bias, scale=None, residual=None, act="none"):
    """1x1 conv (BN folded).  Without `scale` the batch is flattened into M;
    with `scale` (SE gate) the batched form is kept so the per-sample channel
    scale can be applied to the A tile; the residual is added in the epilogue."""
    N, H, W, Cin = x.shape
    Cout = w.shape[-1]
    wb = w.reshape(Cin, Cout)
    if scale is None:
        a = x.reshape(1, N * H * W, Cin)
        res = (residual.reshape(1, N * H * W, Cout)
               if residual is not None else None)
        sc = None
    else:
        a = x.reshape(N, H * W, Cin)
        res = (residual.reshape(N, H * W, Cout)
               if residual is not None else None)
        sc = scale.reshape(N, 1, Cin)
    out = _matmul_bias_act(a, wb, bias, scale=sc, residual=res, act=act)
    return out.reshape(N, H, W, Cout)


@jax.jit
def conv1x1_silu_gap(x, w, bias):
    """Head 1x1 conv + BN + SiLU with the global average pool fused into the
    epilogue -- the head feature map never touches HBM."""
    N, H, W, Cin = x.shape
    Cout = w.shape[-1]
    a = x.reshape(N, H * W, Cin)
    out = _matmul_bias_act(a, w.reshape(Cin, Cout), bias, act="silu",
                           gap=True, out_dtype=jnp.float32)
    return out[:, 0, :]                              # (N, Cout)


@functools.partial(jax.jit, static_argnames=("act",))
def dense(x, w, b, act="none"):
    out = _matmul_bias_act(x[None], w, b, act=act, out_dtype=jnp.float32)
    return out[0]


# --------------------------------------------------------------------------
# Depthwise conv (+BN+SiLU) with fused SE global-average-pool output.
# Stride is handled by phase decomposition (space-to-depth); the output is
# tiled in row strips so the live accumulator stays small.
# --------------------------------------------------------------------------

def _phase_split(x, K, stride, padding):
    """Zero-pad x (N,H,W,C) and deinterleave into stride*stride spatial phases
    so the strided KxK conv becomes stride-1 tap reads in the kernel."""
    N, H, W, C = x.shape
    Ho = (H + 2 * padding - K) // stride + 1
    Wo = (W + 2 * padding - K) // stride + 1
    amax = (K - 1) // stride
    Hpp, Wpp = Ho + amax, Wo + amax
    xp = jnp.pad(x, ((0, 0),
                     (padding, stride * Hpp - H - padding),
                     (padding, stride * Wpp - W - padding),
                     (0, 0)))
    phases = [xp[:, ph::stride, pw::stride, :]
              for ph in range(stride) for pw in range(stride)]
    return jnp.stack(phases, axis=1), Ho, Wo


def _pick_th(Ho, Wo, C, budget=128 * 1024):
    """Largest divisor of Ho keeping the f32 strip accumulator <= budget."""
    th = 1
    for cand in range(1, Ho + 1):
        if Ho % cand == 0 and cand * Wo * C * 4 <= budget:
            th = cand
    return th


def _dwconv_kernel(x_ref, w_ref, b_ref, o_ref, gap_ref, *, stride, inv_area):
    K = w_ref.shape[0]
    TH, Wo, C = o_ref.shape[1], o_ref.shape[2], o_ref.shape[3]
    r = pl.program_id(1)
    row0 = r * TH

    acc = jnp.zeros((TH, Wo, C), jnp.float32)
    for kh in range(K):                              # static tap loop
        ph, ah = kh % stride, kh // stride
        for kw in range(K):
            pw, aw = kw % stride, kw // stride
            # Only the TH rows needed by this tap are read from the ref.
            rows = x_ref[0, ph * stride + pw, pl.ds(row0 + ah, TH), :, :]
            xs = rows[:, aw:aw + Wo, :].astype(jnp.float32)
            acc = acc + xs * w_ref[kh, kw, :]
    acc = acc + b_ref[0]
    y = _silu(acc)
    o_ref[0] = y.astype(o_ref.dtype)

    # fused squeeze-and-excitation global average pool, accumulated across
    # the (resident) strip axis.
    @pl.when(r == 0)
    def _():
        gap_ref[...] = jnp.zeros_like(gap_ref)

    g = jnp.sum(y.astype(jnp.float32), axis=0)       # (Wo, C)
    g = jnp.sum(g, axis=0, keepdims=True) * inv_area  # (1, C)
    gap_ref[0] = gap_ref[0] + g


@functools.partial(jax.jit, static_argnames=("stride", "padding"))
def depthwise_conv_bn_silu_gap(x, w, bias, stride, padding):
    """x:(N,H,W,C) bf16, w:(K,K,C) f32 (BN folded).  Returns (y bf16, gap f32)."""
    N, H, W, C = x.shape
    K = w.shape[0]
    xph, Ho, Wo = _phase_split(x, K, stride, padding)
    S2, Hpp, Wpp = xph.shape[1], xph.shape[2], xph.shape[3]
    TH = _pick_th(Ho, Wo, C)
    Rt = Ho // TH
    inv_area = 1.0 / float(Ho * Wo)

    y, gap = pl.pallas_call(
        functools.partial(_dwconv_kernel, stride=stride, inv_area=inv_area),
        out_shape=(jax.ShapeDtypeStruct((N, Ho, Wo, C), jnp.bfloat16),
                   jax.ShapeDtypeStruct((N, 1, C), jnp.float32)),
        grid=(N, Rt),
        in_specs=[
            # input resident across the strip axis (index map ignores r)
            pl.BlockSpec((1, S2, Hpp, Wpp, C), lambda n, r: (n, 0, 0, 0, 0)),
            pl.BlockSpec((K, K, C), lambda n, r: (0, 0, 0)),
            pl.BlockSpec((1, C), lambda n, r: (0, 0)),
        ],
        out_specs=(
            pl.BlockSpec((1, TH, Wo, C), lambda n, r: (n, r, 0, 0)),
            pl.BlockSpec((1, 1, C), lambda n, r: (n, 0, 0)),   # GAP accumulator
        ),
        compiler_params=pltpu.CompilerParams(
            dimension_semantics=("parallel", "arbitrary")),
    )(xph, w, bias.reshape(1, C))
    return y, gap[:, 0, :]


# --------------------------------------------------------------------------
# Fused squeeze-and-excitation MLP: sigmoid(W2 @ silu(W1 @ s + b1) + b2)
# --------------------------------------------------------------------------

def _se_kernel(s_ref, w1_ref, b1_ref, w2_ref, b2_ref, o_ref):
    s = s_ref[...]
    h = jnp.dot(s, w1_ref[...], preferred_element_type=jnp.float32) + b1_ref[...]
    h = h * jax.nn.sigmoid(h)                        # SiLU
    o = jnp.dot(h, w2_ref[...], preferred_element_type=jnp.float32) + b2_ref[...]
    o_ref[...] = jax.nn.sigmoid(o)


@jax.jit
def se_module(s, w1, b1, w2, b2):
    """s:(N,C) -> per-(sample,channel) gate (N,C) in a single pallas_call."""
    N, C = s.shape
    Sq = w1.shape[1]
    Cp = _round_up(C, 128)
    Sp = _round_up(Sq, 128)
    Nr = _round_up(max(N, 8), 8)
    s_p = jnp.zeros((Nr, Cp), jnp.float32).at[:N, :C].set(s)
    w1_p = jnp.zeros((Cp, Sp), jnp.float32).at[:C, :Sq].set(w1)
    b1_p = jnp.zeros((1, Sp), jnp.float32).at[0, :Sq].set(b1)
    w2_p = jnp.zeros((Sp, Cp), jnp.float32).at[:Sq, :C].set(w2)
    b2_p = jnp.zeros((1, Cp), jnp.float32).at[0, :C].set(b2)
    out = pl.pallas_call(
        _se_kernel,
        out_shape=jax.ShapeDtypeStruct((Nr, Cp), jnp.float32),
        grid=(1,),
        in_specs=[pl.BlockSpec((Nr, Cp), lambda i: (0, 0)),
                  pl.BlockSpec((Cp, Sp), lambda i: (0, 0)),
                  pl.BlockSpec((1, Sp), lambda i: (0, 0)),
                  pl.BlockSpec((Sp, Cp), lambda i: (0, 0)),
                  pl.BlockSpec((1, Cp), lambda i: (0, 0))],
        out_specs=pl.BlockSpec((Nr, Cp), lambda i: (0, 0)),
        compiler_params=pltpu.CompilerParams(
            dimension_semantics=("arbitrary",)),
    )(s_p, w1_p, b1_p, w2_p, b2_p)
    return out[:N, :C]


# --------------------------------------------------------------------------
# Stem conv (3x3, stride 2, Cin=3) via im2col + the matmul kernel.
# --------------------------------------------------------------------------

def _im2col(x, K, stride, padding):
    N, H, W, C = x.shape
    Ho = (H + 2 * padding - K) // stride + 1
    Wo = (W + 2 * padding - K) // stride + 1
    xp = jnp.pad(x, ((0, 0), (padding, padding), (padding, padding), (0, 0)))
    cols = []
    for kh in range(K):
        for kw in range(K):
            cols.append(xp[:, kh:kh + (Ho - 1) * stride + 1:stride,
                            kw:kw + (Wo - 1) * stride + 1:stride, :])
    patches = jnp.concatenate(cols, axis=-1).reshape(N, Ho * Wo, K * K * C)
    return patches, Ho, Wo


@functools.partial(jax.jit, static_argnames=("stride", "padding"))
def conv2d_bn_silu_im2col(x, w, bias, stride, padding):
    # TODO(synk): a dedicated phase-split stem kernel would avoid the im2col
    # copy; the stem is a small fraction of total cost so im2col is kept.
    KH, KW, Cin, Cout = w.shape
    N = x.shape[0]
    patches, Ho, Wo = _im2col(x, KH, stride, padding)
    a = patches.reshape(1, N * Ho * Wo, KH * KW * Cin)
    out = _matmul_bias_act(a, w.reshape(KH * KW * Cin, Cout), bias, act="silu")
    return out.reshape(N, Ho, Wo, Cout)


# --------------------------------------------------------------------------
# Deterministic synthetic parameters (shapes follow torchvision efficientnet_b0)
# --------------------------------------------------------------------------

_KEY = jax.random.PRNGKey(0)
_COUNTER = [0]
_BN_EPS = 1e-3  # torchvision EfficientNet uses BatchNorm2d(eps=1e-3)


def _nkey():
    _COUNTER[0] += 1
    return jax.random.fold_in(_KEY, _COUNTER[0])


def _bn_fold(w, cout):
    gamma = 1.0 + 0.1 * jax.random.normal(_nkey(), (cout,), jnp.float32)
    beta = 0.1 * jax.random.normal(_nkey(), (cout,), jnp.float32)
    mean = 0.1 * jax.random.normal(_nkey(), (cout,), jnp.float32)
    var = 0.5 + jax.random.uniform(_nkey(), (cout,), jnp.float32)
    scale = gamma / jnp.sqrt(var + _BN_EPS)
    return w * scale, beta - mean * scale


def _conv_bn(kh, kw, cin, cout):
    fan_in = kh * kw * cin
    w = jax.random.normal(_nkey(), (kh, kw, cin, cout), jnp.float32) * (fan_in ** -0.5)
    return _bn_fold(w, cout)


def _dwconv_bn(k, c):
    w = jax.random.normal(_nkey(), (k, k, c), jnp.float32) * ((k * k) ** -0.5)
    return _bn_fold(w, c)


def _linear(cin, cout):
    w = jax.random.normal(_nkey(), (cin, cout), jnp.float32) * (cin ** -0.5)
    b = 0.01 * jax.random.normal(_nkey(), (cout,), jnp.float32)
    return w, b


# EfficientNet-B0 inverted-residual settings:
# (expand_ratio, kernel, stride, in_channels, out_channels, num_layers)
_STAGES = [
    (1, 3, 1, 32, 16, 1),
    (6, 3, 2, 16, 24, 2),
    (6, 5, 2, 24, 40, 2),
    (6, 3, 2, 40, 80, 3),
    (6, 5, 1, 80, 112, 3),
    (6, 5, 2, 112, 192, 4),
    (6, 3, 1, 192, 320, 1),
]


def init_params(nclass):
    p = {"stem": _conv_bn(3, 3, 3, 32)}
    blocks = []
    for (exp, k, s, cin, cout, nlayers) in _STAGES:
        for li in range(nlayers):
            bcin = cin if li == 0 else cout
            bstride = s if li == 0 else 1
            cexp = bcin * exp
            blk = {"meta": (k, bstride, bcin, cout, exp)}
            if exp != 1:
                blk["expand"] = _conv_bn(1, 1, bcin, cexp)
            blk["dw"] = _dwconv_bn(k, cexp)
            sq = max(1, bcin // 4)                 # SE squeeze channels
            blk["se1"] = _linear(cexp, sq)
            blk["se2"] = _linear(sq, cexp)
            blk["proj"] = _conv_bn(1, 1, cexp, cout)
            blocks.append(blk)
    p["blocks"] = blocks
    p["head"] = _conv_bn(1, 1, 320, 1280)
    p["fc1"] = _linear(1280, 512)                  # modified classifier
    p["fc2"] = _linear(512, nclass)
    return p


# --------------------------------------------------------------------------
# Forward pass (ModifiedEfficientNetB0Model.forward, eval mode)
# --------------------------------------------------------------------------

def efficientnet_b0_forward(params, x_nchw):
    # NCHW (PyTorch) -> NHWC so channels sit on the 128-lane axis; bf16
    # activations end-to-end (f32 MXU accumulation inside the kernels).
    x = jnp.transpose(x_nchw, (0, 2, 3, 1)).astype(jnp.bfloat16)

    w, b = params["stem"]
    x = conv2d_bn_silu_im2col(x, w, b, stride=2, padding=1)

    for blk in params["blocks"]:
        k, stride, bcin, cout, exp = blk["meta"]
        residual = x if (stride == 1 and bcin == cout) else None
        if exp != 1:
            w, b = blk["expand"]
            x = conv1x1_bn_act(x, w, b, act="silu")
        # depthwise conv + BN + SiLU, with the SE global-average-pool fused in
        w, b = blk["dw"]
        x, s = depthwise_conv_bn_silu_gap(x, w, b, stride=stride,
                                          padding=(k - 1) // 2)
        # squeeze-and-excitation gate (single fused kernel)
        (w1, b1), (w2, b2) = blk["se1"], blk["se2"]
        gate = se_module(s, w1, b1, w2, b2)                     # (N, Cexp)
        # projection 1x1 conv: SE scale on the A tile + residual in the
        # epilogue.  StochasticDepth is identity in eval mode.
        w, b = blk["proj"]
        x = conv1x1_bn_act(x, w, b, scale=gate, residual=residual, act="none")

    # head 1x1 conv + SiLU with the final global average pool fused in
    w, b = params["head"]
    feat = conv1x1_silu_gap(x, w, b)                            # (N, 1280)

    w, b = params["fc1"]
    h = dense(feat, w, b, act="relu")
    # TODO(synk): nn.Dropout(0.5) is identity in eval mode; training-mode RNG masking omitted.
    w, b = params["fc2"]
    return dense(h, w, b, act="none")                           # (N, nclass)


if __name__ == "__main__":
    nclass = 10
    params = init_params(nclass)
    x = jax.random.normal(jax.random.PRNGKey(0), (2, 3, 32, 32), jnp.float32)
    out = efficientnet_b0_forward(params, x)
    out = jax.block_until_ready(out)
    assert out.shape == (2, nclass)
    assert bool(jnp.all(jnp.isfinite(out)))
    print("KERNEL_OK")
</pallas_src>

<mosaic_0001>
module attributes {stable_mosaic.version = 11 : i64} {
  func.func @_mm_kernel(%arg0: i32, %arg1: i32, %arg2: memref<1x512x27xbf16, #tpu.memory_space<vmem>>, %arg3: memref<27x32xbf16, #tpu.memory_space<vmem>>, %arg4: memref<1x32xf32, #tpu.memory_space<vmem>>, %arg5: memref<1x512x32xbf16, #tpu.memory_space<vmem>>) attributes {dimension_semantics = [#tpu.dimension_semantics<parallel>, #tpu.dimension_semantics<parallel>], iteration_bounds = array<i64: 1, 1>, scalar_prefetch = 0 : i64, scratch_operands = 0 : i64, tpu.core_type = #tpu.core_type<tc>, window_params = [{transform_indices = @transform_0, window_bounds = array<i64: 1, 512, 27>}, {pipeline_mode = #tpu.pipeline_mode<synchronous>, transform_indices = @transform_1, window_bounds = array<i64: 27, 32>}, {pipeline_mode = #tpu.pipeline_mode<synchronous>, transform_indices = @transform_2, window_bounds = array<i64: 1, 32>}, {transform_indices = @transform_3, window_bounds = array<i64: 1, 512, 32>}]} {
    %c0 = arith.constant 0 : index
    %c0_0 = arith.constant 0 : index
    %c0_1 = arith.constant 0 : index
    %0 = vector.load %arg2[%c0, %c0_0, %c0_1] : memref<1x512x27xbf16, #tpu.memory_space<vmem>>, vector<1x512x27xbf16>
    %1 = vector.shape_cast %0 : vector<1x512x27xbf16> to vector<512x27xbf16>
    %c0_2 = arith.constant 0 : index
    %c0_3 = arith.constant 0 : index
    %2 = vector.load %arg3[%c0_2, %c0_3] : memref<27x32xbf16, #tpu.memory_space<vmem>>, vector<27x32xbf16>
    %cst = arith.constant dense<0.000000e+00> : vector<512x32xf32>
    %3 = tpu.matmul %1, %2, %cst {dimension_numbers = #tpu.dot_dimension_numbers<[1], [0], [0], [1], [0, 0, 1, 1], [], []>} : vector<512x27xbf16>, vector<27x32xbf16>, vector<512x32xf32> -> vector<512x32xf32>
    %c0_4 = arith.constant 0 : index
    %c0_5 = arith.constant 0 : index
    %4 = vector.load %arg4[%c0_4, %c0_5] : memref<1x32xf32, #tpu.memory_space<vmem>>, vector<1x32xf32>
    %5 = vector.broadcast %4 : vector<1x32xf32> to vector<512x32xf32>
    %6 = arith.addf %3, %5 : vector<512x32xf32>
    %7 = arith.negf %6 : vector<512x32xf32>
    %8 = math.exp %7 : vector<512x32xf32>
    %cst_6 = arith.constant 1.000000e+00 : f32
    %9 = vector.broadcast %cst_6 : f32 to vector<512x32xf32>
    %10 = arith.addf %9, %8 : vector<512x32xf32>
    %11 = arith.divf %9, %10 : vector<512x32xf32>
    %12 = arith.mulf %6, %11 : vector<512x32xf32>
    %13 = arith.truncf %12 : vector<512x32xf32> to vector<512x32xbf16>
    %c0_7 = arith.constant 0 : index
    %c0_8 = arith.constant 0 : index
    %c0_9 = arith.constant 0 : index
    %14 = vector.load %arg5[%c0_7, %c0_8, %c0_9] : memref<1x512x32xbf16, #tpu.memory_space<vmem>>, vector<1x512x32xbf16>
    %15 = vector.shape_cast %14 : vector<1x512x32xbf16> to vector<512x32xbf16>
    %16 = vector.shape_cast %13 : vector<512x32xbf16> to vector<1x512x32xbf16>
    tpu.vector_store %arg5[%c0_7, %c0_8, %c0_9], %16 {strides = array<i32>} : memref<1x512x32xbf16, #tpu.memory_space<vmem>>, vector<1x512x32xbf16>,
    return
  }
  func.func @transform_0(%arg0: i32, %arg1: i32) -> (i32, i32, i32) {
    %c0_i32 = arith.constant 0 : i32
    %c0_i32_0 = arith.constant 0 : i32
    return %arg0, %arg1, %c0_i32 : i32, i32, i32
  }
  func.func @transform_1(%arg0: i32, %arg1: i32) -> (i32, i32) {
    %c0_i32 = arith.constant 0 : i32
    %c0_i32_0 = arith.constant 0 : i32
    %c0_i32_1 = arith.constant 0 : i32
    return %c0_i32, %c0_i32_0 : i32, i32
  }
  func.func @transform_2(%arg0: i32, %arg1: i32) -> (i32, i32) {
    %c0_i32 = arith.constant 0 : i32
    %c0_i32_0 = arith.constant 0 : i32
    %c0_i32_1 = arith.constant 0 : i32
    return %c0_i32, %c0_i32_0 : i32, i32
  }
  func.func @transform_3(%arg0: i32, %arg1: i32) -> (i32, i32, i32) {
    %c0_i32 = arith.constant 0 : i32
    %c0_i32_0 = arith.constant 0 : i32
    return %arg0, %arg1, %c0_i32 : i32, i32, i32
  }
}

</mosaic_0001>

<llo_original>
// kernel: conv2d_bn_silu_im2col.1
$region0: #{conv2d_bn_silu_im2col.1}
  #allocation0 [shape = 'u32[]', space=smem, size = 0x4, offset = 0x4, fixed_abs, tag = 'smem constant byte address 0x4 - core index']
  #allocation1 [shape = 'u32[144,128]{1,0:T(1,128)}', space=vmem, size = 0x12000, scoped, tag = 'internal scratch']
  %s0 = inlined_call_operand.vmem [shape: bf16[1,512,27], index: 0, kind: input, shape index: {}]
  %s1 = inlined_call_operand.vmem [shape: bf16[27,32], index: 1, kind: input, shape index: {}]
  %s2 = inlined_call_operand.vmem [shape: f32[1,32], index: 2, kind: input, shape index: {}]
  %s3 = inlined_call_operand.hbm [shape: bf16[1,512,32], index: 3, kind: output, shape index: {}]
  %s4 = sld [smem:[#allocation0]]
  $region22: #{conv2d_bn_silu_im2col.1} parent=0
    _
  %s6 = ssub.s32 1, %s4
  %s7 = scalar_select 0, %s6, %s4
  $region1: #{conv2d_bn_silu_im2col.1} parent=0
    #allocation2 [shape = 'u8[131072]{0}', space=vmem, size = 0x20000, scoped, tag = 'output window, operand 0, single buffered']
    #allocation3 [shape = 's32[1]{0}', space=sflag, size = 0x4, scoped, tag = 'scoped memory for conv2d_bn_silu_im2col.1']
    %8 = vsyncpa [#allocation3], 0
    // Predicated region
    $region2: #{conv2d_bn_silu_im2col.1} parent=1 // pred_check
      _
    $region3: #{conv2d_bn_silu_im2col.1} parent=1 // pred_check_branch
      %10 = sbr.rel (0) target = $region5
    $region4: #{conv2d_bn_silu_im2col.1} parent=1 // pred_region
      _
    $region5: #{conv2d_bn_silu_im2col.1} parent=1 // pred_fallthru
      _
    // Predicated region
    $region6: #{conv2d_bn_silu_im2col.1} parent=1 // pred_check
      _
    $region7: #{conv2d_bn_silu_im2col.1} parent=1 // pred_check_branch
      %12 = sbr.rel (0) target = $region9
    $region8: #{conv2d_bn_silu_im2col.1} parent=1 // pred_region
      _
    $region9: #{conv2d_bn_silu_im2col.1} parent=1 // pred_fallthru
      _
    // Predicated region
    $region10: #{conv2d_bn_silu_im2col.1} parent=1 // pred_check
      _
    $region11: #{conv2d_bn_silu_im2col.1} parent=1 // pred_check_branch
      %14 = sbr.rel (0) target = $region13
    $region12: #{conv2d_bn_silu_im2col.1} parent=1 // pred_region
      _
    $region13: #{conv2d_bn_silu_im2col.1} parent=1 // pred_fallthru
      _
    %v16 = vld [vmem:[%s0] sm:$0xf]
    %v17 = vld [vmem:[%s0 + $0x4] sm:$0xf]
    %v18 = vld [vmem:[%s0 + $0x8] sm:$0xf]
    %v19 = vld [vmem:[%s0 + $0xc] sm:$0xf]
    %v20 = vld [vmem:[%s0 + $0x10] sm:$0xf]
    %v21 = vld [vmem:[%s0 + $0x14] sm:$0xf]
    %v22 = vld [vmem:[%s0 + $0x18] sm:$0xf]
    %v23 = vld [vmem:[%s0 + $0x1c] sm:$0xf]
    %v24 = vld [vmem:[%s0 + $0x20] sm:$0xf]
    %v25 = vld [vmem:[%s0 + $0x24] sm:$0xf]
    %v26 = vld [vmem:[%s0 + $0x28] sm:$0xf]
    %v27 = vld [vmem:[%s0 + $0x2c] sm:$0xf]
    %v28 = vld [vmem:[%s0 + $0x30] sm:$0xf]
    %v29 = vld [vmem:[%s0 + $0x34] sm:$0xf]
    %v30 = vld [vmem:[%s0 + $0x38] sm:$0xf]
    %v31 = vld [vmem:[%s0 + $0x3c] sm:$0xf]
    %v32 = vld [vmem:[%s0 + $0x40] sm:$0xf]
    %v33 = vld [vmem:[%s0 + $0x44] sm:$0xf]
    %v34 = vld [vmem:[%s0 + $0x48] sm:$0xf]
    %v35 = vld [vmem:[%s0 + $0x4c] sm:$0xf]
    %v36 = vld [vmem:[%s0 + $0x50] sm:$0xf]
    %v37 = vld [vmem:[%s0 + $0x54] sm:$0xf]
    %v38 = vld [vmem:[%s0 + $0x58] sm:$0xf]
    %v39 = vld [vmem:[%s0 + $0x5c] sm:$0xf]
    %v40 = vld [vmem:[%s0 + $0x60] sm:$0xf]
    %v41 = vld [vmem:[%s0 + $0x64] sm:$0xf]
    %v42 = vld [vmem:[%s0 + $0x68] sm:$0xf]
    %v43 = vld [vmem:[%s0 + $0x6c] sm:$0xf]
    %v44 = vld [vmem:[%s0 + $0x70] sm:$0xf]
    %v45 = vld [vmem:[%s0 + $0x74] sm:$0xf]
    %v46 = vld [vmem:[%s0 + $0x78] sm:$0xf]
    %v47 = vld [vmem:[%s0 + $0x7c] sm:$0xf]
    %v48 = vld [vmem:[%s0 + $0x80] sm:$0xf]
    %v49 = vld [vmem:[%s0 + $0x84] sm:$0xf]
    %v50 = vld [vmem:[%s0 + $0x88] sm:$0xf]
    %v51 = vld [vmem:[%s0 + $0x8c] sm:$0xf]
    %v52 = vld [vmem:[%s0 + $0x90] sm:$0xf]
    %v53 = vld [vmem:[%s0 + $0x94] sm:$0xf]
    %v54 = vld [vmem:[%s0 + $0x98] sm:$0xf]
    %v55 = vld [vmem:[%s0 + $0x9c] sm:$0xf]
    %v56 = vld [vmem:[%s0 + $0xa0] sm:$0xf]
    %v57 = vld [vmem:[%s0 + $0xa4] sm:$0xf]
    %v58 = vld [vmem:[%s0 + $0xa8] sm:$0xf]
    %v59 = vld [vmem:[%s0 + $0xac] sm:$0xf]
    %v60 = vld [vmem:[%s0 + $0xb0] sm:$0xf]
    %v61 = vld [vmem:[%s0 + $0xb4] sm:$0xf]
    %v62 = vld [vmem:[%s0 + $0xb8] sm:$0xf]
    %v63 = vld [vmem:[%s0 + $0xbc] sm:$0xf]
    %v64 = vld [vmem:[%s0 + $0xc0] sm:$0xf]
    %v65 = vld [vmem:[%s0 + $0xc4] sm:$0xf]
    %v66 = vld [vmem:[%s0 + $0xc8] sm:$0xf]
    %v67 = vld [vmem:[%s0 + $0xcc] sm:$0xf]
    %v68 = vld [vmem:[%s0 + $0xd0] sm:$0xf]
    %v69 = vld [vmem:[%s0 + $0xd4] sm:$0xf]
    %v70 = vld [vmem:[%s0 + $0xd8] sm:$0xf]
    %v71 = vld [vmem:[%s0 + $0xdc] sm:$0xf]
    %v72 = vld [vmem:[%s0 + $0xe0] sm:$0xf]
    %v73 = vld [vmem:[%s0 + $0xe4] sm:$0xf]
    %v74 = vld [vmem:[%s0 + $0xe8] sm:$0xf]
    %v75 = vld [vmem:[%s0 + $0xec] sm:$0xf]
    %v76 = vld [vmem:[%s0 + $0xf0] sm:$0xf]
    %v77 = vld [vmem:[%s0 + $0xf4] sm:$0xf]
    %v78 = vld [vmem:[%s0 + $0xf8] sm:$0xf]
    %v79 = vld [vmem:[%s0 + $0xfc] sm:$0xf]
    %v80 = vld [vmem:[%s1] sm:$0xf]
    %v81 = vld [vmem:[%s1 + $0x4] sm:$0xf]
    %v82 = vld [vmem:[%s1 + $0x8] sm:$0xf]
    %v83 = vld [vmem:[%s1 + $0xc] sm:$0x3]
    %v84 = vld [vmem:[%s2] sm:$0x1]
    %v86 = vlaneseq
    %v87 = vshrl.u32 %v86, 7
    %v88 = vsub.s32 0, %v87
    %v89 = vrot.slane %v84, %v88
    %v155 = vunpack.c.l.b16 %v16
    %v156 = vunpack.c.l.b16 %v17
    %v157 = vunpack.c.l.b16 %v18
    %v158 = vunpack.c.l.b16 %v19
    %v159 = vunpack.c.l.b16 %v20
    %v160 = vunpack.c.l.b16 %v21
    %v161 = vunpack.c.l.b16 %v22
    %v162 = vunpack.c.l.b16 %v23
    %v163 = vunpack.c.l.b16 %v24
    %v164 = vunpack.c.l.b16 %v25
    %v165 = vunpack.c.l.b16 %v26
    %v166 = vunpack.c.l.b16 %v27
    %v167 = vunpack.c.l.b16 %v28
    %v168 = vunpack.c.l.b16 %v29
    %v169 = vunpack.c.l.b16 %v30
    %v170 = vunpack.c.l.b16 %v31
    %v171 = vunpack.c.l.b16 %v32
    %v172 = vunpack.c.l.b16 %v33
    %v173 = vunpack.c.l.b16 %v34
    %v174 = vunpack.c.l.b16 %v35
    %v175 = vunpack.c.l.b16 %v36
    %v176 = vunpack.c.l.b16 %v37
    %v177 = vunpack.c.l.b16 %v38
    %v178 = vunpack.c.l.b16 %v39
    %v179 = vunpack.c.l.b16 %v40
    %v180 = vunpack.c.l.b16 %v41
    %v181 = vunpack.c.l.b16 %v42
    %v182 = vunpack.c.l.b16 %v43
    %v183 = vunpack.c.l.b16 %v44
    %v184 = vunpack.c.l.b16 %v45
    %v185 = vunpack.c.l.b16 %v46
    %v186 = vunpack.c.l.b16 %v47
    %v187 = vunpack.c.l.b16 %v48
    %v188 = vunpack.c.l.b16 %v49
    %v189 = vunpack.c.l.b16 %v50
    %v190 = vunpack.c.l.b16 %v51
    %v191 = vunpack.c.l.b16 %v52
    %v192 = vunpack.c.l.b16 %v53
    %v193 = vunpack.c.l.b16 %v54
    %v194 = vunpack.c.l.b16 %v55
    %v195 = vunpack.c.l.b16 %v56
    %v196 = vunpack.c.l.b16 %v57
    %v197 = vunpack.c.l.b16 %v58
    %v198 = vunpack.c.l.b16 %v59
    %v199 = vunpack.c.l.b16 %v60
    %v200 = vunpack.c.l.b16 %v61
    %v201 = vunpack.c.l.b16 %v62
    %v202 = vunpack.c.l.b16 %v63
    %v203 = vunpack.c.l.b16 %v64
    %v204 = vunpack.c.l.b16 %v65
    %v205 = vunpack.c.l.b16 %v66
    %v206 = vunpack.c.l.b16 %v67
    %v207 = vunpack.c.l.b16 %v68
    %v208 = vunpack.c.l.b16 %v69
    %v209 = vunpack.c.l.b16 %v70
    %v210 = vunpack.c.l.b16 %v71
    %v211 = vunpack.c.l.b16 %v72
    %v212 = vunpack.c.l.b16 %v73
    %v213 = vunpack.c.l.b16 %v74
    %v214 = vunpack.c.l.b16 %v75
    %v215 = vunpack.c.l.b16 %v76
    %v216 = vunpack.c.l.b16 %v77
    %v217 = vunpack.c.l.b16 %v78
    %v218 = vunpack.c.l.b16 %v79
    %v219 = vpack.c.b16 %v156, %v155
    %v220 = vpack.c.b16 %v158, %v157
    %v221 = vpack.c.b16 %v160, %v159
    %v222 = vpack.c.b16 %v162, %v161
    %v223 = vpack.c.b16 %v164, %v163
    %v224 = vpack.c.b16 %v166, %v165
    %v225 = vpack.c.b16 %v168, %v167
    %v226 = vpack.c.b16 %v170, %v169
    %v227 = vpack.c.b16 %v172, %v171
    %v228 = vpack.c.b16 %v174, %v173
    %v229 = vpack.c.b16 %v176, %v175
    %v230 = vpack.c.b16 %v178, %v177
    %v231 = vpack.c.b16 %v180, %v179
    %v232 = vpack.c.b16 %v182, %v181
    %v233 = vpack.c.b16 %v184, %v183
    %v234 = vpack.c.b16 %v186, %v185
    %v235 = vpack.c.b16 %v188, %v187
    %v236 = vpack.c.b16 %v190, %v189
    %v237 = vpack.c.b16 %v192, %v191
    %v238 = vpack.c.b16 %v194, %v193
    %v239 = vpack.c.b16 %v196, %v195
    %v240 = vpack.c.b16 %v198, %v197
    %v241 = vpack.c.b16 %v200, %v199
    %v242 = vpack.c.b16 %v202, %v201
    %v243 = vpack.c.b16 %v204, %v203
    %v244 = vpack.c.b16 %v206, %v205
    %v245 = vpack.c.b16 %v208, %v207
    %v246 = vpack.c.b16 %v210, %v209
    %v247 = vpack.c.b16 %v212, %v211
    %v248 = vpack.c.b16 %v214, %v213
    %v249 = vpack.c.b16 %v216, %v215
    %v250 = vpack.c.b16 %v218, %v217
    %v255 = vunpack.c.l.b16 %v80
    %v256 = vunpack.c.l.b16 %v81
    %v257 = vunpack.c.l.b16 %v82
    %v258 = vunpack.c.l.b16 %v83
    %v259 = vpack.c.b16 %v256, %v255
    %v260 = vpack.c.b16 %v258, %v257
    %vm262 = vcmask 220160
    %v264 = vsel %vm262, %v219, 0
    %v267 = vsel %vm262, %v220, 0
    %v270 = vsel %vm262, %v221, 0
    %v273 = vsel %vm262, %v222, 0
    %v276 = vsel %vm262, %v223, 0
    %v279 = vsel %vm262, %v224, 0
    %v282 = vsel %vm262, %v225, 0
    %v285 = vsel %vm262, %v226, 0
    %v288 = vsel %vm262, %v227, 0
    %v291 = vsel %vm262, %v228, 0
    %v294 = vsel %vm262, %v229, 0
    %v297 = vsel %vm262, %v230, 0
    %v300 = vsel %vm262, %v231, 0
    %v303 = vsel %vm262, %v232, 0
    %v306 = vsel %vm262, %v233, 0
    %v309 = vsel %vm262, %v234, 0
    %v312 = vsel %vm262, %v235, 0
    %v315 = vsel %vm262, %v236, 0
    %v318 = vsel %vm262, %v237, 0
    %v321 = vsel %vm262, %v238, 0
    %v324 = vsel %vm262, %v239, 0
    %v327 = vsel %vm262, %v240, 0
    %v330 = vsel %vm262, %v241, 0
    %v333 = vsel %vm262, %v242, 0
    %v336 = vsel %vm262, %v243, 0
    %v339 = vsel %vm262, %v244, 0
    %v342 = vsel %vm262, %v245, 0
    %v345 = vsel %vm262, %v246, 0
    %v348 = vsel %vm262, %v247, 0
    %v351 = vsel %vm262, %v248, 0
    %v354 = vsel %vm262, %v249, 0
    %v357 = vsel %vm262, %v250, 0
    %vm359 = vcmask 1044480
    %vm360 = vcmask 1045504
    %v361 = vsel %vm359, 4294967295, 65535
    %v362 = vsel %vm360, %v361, 0
    %v364 = vand.u32 %v260, %v362
    %366 = vmatprep.subr.bf16.mxu0 0
    %367 = vmatpush1.bf16.msra.mxu0 %v259
    %368 = vmatprep.subr.bf16.mxu0 0
    %369 = vmatpush1.bf16.msra.mxu0 %v364
    %370 = vmatprep.subr.bf16.mxu0 0
    %371 = vmatpush1.bf16.msra.mxu0 0
    %372 = vmatprep.subr.bf16.mxu0 0
    %373 = vmatpush1.bf16.msra.mxu0 0
    %374 = vmatprep.subr.bf16.mxu0 0
    %375 = vmatpush1.bf16.msra.mxu0 0
    %376 = vmatprep.subr.bf16.mxu0 0
    %377 = vmatpush1.bf16.msra.mxu0 0
    %378 = vmatprep.subr.bf16.mxu0 0
    %379 = vmatpush1.bf16.msra.mxu0 0
    %380 = vmatprep.subr.bf16.mxu0 0
    %381 = vmatpush1.bf16.msra.mxu0 0
    %382 = vmatprep.subr.bf16.mxu0 0
    %383 = vmatpush1.bf16.msra.mxu0 0
    %384 = vmatprep.subr.bf16.mxu0 0
    %385 = vmatpush1.bf16.msra.mxu0 0
    %386 = vmatprep.subr.bf16.mxu0 0
    %387 = vmatpush1.bf16.msra.mxu0 0
    %388 = vmatprep.subr.bf16.mxu0 0
    %389 = vmatpush1.bf16.msra.mxu0 0
    %390 = vmatprep.subr.bf16.mxu0 0
    %391 = vmatpush1.bf16.msra.mxu0 0
    %392 = vmatprep.subr.bf16.mxu0 0
    %393 = vmatpush1.bf16.msra.mxu0 0
    %394 = vmatprep.subr.bf16.mxu0 0
    %395 = vmatpush1.bf16.msra.mxu0 0
    %396 = vmatprep.subr.bf16.mxu0 0
    %397 = vmatpush1.bf16.msra.mxu0 0
    %398 = vmatprep.mubr.bf16.mxu0 0
    %399 = vmatmul.mubr.bf16.gmra.mrb[0].mxu0 %v264
    %v400 = vpop.f32.mrb[0].mxu0
    %v401 = vadd.f32 %v89, %v400
    %v402 = vpop.f32.mrb[0].mxu0
    %v403 = vpop.f32.mrb[0].mxu0
    %v404 = vadd.f32 %v89, %v403
    %v405 = vpop.f32.mrb[0].mxu0
    %406 = vmatprep.mubr.bf16.mxu0 0
    %407 = vmatmul.mubr.bf16.gmra.mrb[0].mxu0 %v267
    %v408 = vpop.f32.mrb[0].mxu0
    %v409 = vadd.f32 %v89, %v408
    %v410 = vpop.f32.mrb[0].mxu0
    %v411 = vpop.f32.mrb[0].mxu0
    %v412 = vadd.f32 %v89, %v411
    %v413 = vpop.f32.mrb[0].mxu0
    %414 = vmatprep.mubr.bf16.mxu0 0
    %415 = vmatmul.mubr.bf16.gmra.mrb[0].mxu0 %v270
    %v416 = vpop.f32.mrb[0].mxu0
    %v417 = vadd.f32 %v89, %v416
    %v418 = vpop.f32.mrb[0].mxu0
    %v419 = vpop.f32.mrb[0].mxu0
    %v420 = vadd.f32 %v89, %v419
    %v421 = vpop.f32.mrb[0].mxu0
    %422 = vmatprep.mubr.bf16.mxu0 0
    %423 = vmatmul.mubr.bf16.gmra.mrb[0].mxu0 %v273
    %v424 = vpop.f32.mrb[0].mxu0
    %v425 = vadd.f32 %v89, %v424
    %v426 = vpop.f32.mrb[0].mxu0
    %v427 = vpop.f32.mrb[0].mxu0
    %v428 = vadd.f32 %v89, %v427
    %v429 = vpop.f32.mrb[0].mxu0
    %430 = vmatprep.mubr.bf16.mxu0 0
    %431 = vmatmul.mubr.bf16.gmra.mrb[0].mxu0 %v276
    %v432 = vpop.f32.mrb[0].mxu0
    %v433 = vadd.f32 %v89, %v432
    %v434 = vpop.f32.mrb[0].mxu0
    %v435 = vpop.f32.mrb[0].mxu0
    %v436 = vadd.f32 %v89, %v435
    %v437 = vpop.f32.mrb[0].mxu0
    %438 = vmatprep.mubr.bf16.mxu0 0
    %439 = vmatmul.mubr.bf16.gmra.mrb[0].mxu0 %v279
    %v440 = vpop.f32.mrb[0].mxu0
    %v441 = vadd.f32 %v89, %v440
    %v442 = vpop.f32.mrb[0].mxu0
    %v443 = vpop.f32.mrb[0].mxu0
    %v444 = vadd.f32 %v89, %v443
    %v445 = vpop.f32.mrb[0].mxu0
    %446 = vmatprep.mubr.bf16.mxu0 0
    %447 = vmatmul.mubr.bf16.gmra.mrb[0].mxu0 %v282
    %v448 = vpop.f32.mrb[0].mxu0
    %v449 = vadd.f32 %v89, %v448
    %v450 = vpop.f32.mrb[0].mxu0
    %v451 = vpop.f32.mrb[0].mxu0
    %v452 = vadd.f32 %v89, %v451
    %v453 = vpop.f32.mrb[0].mxu0
    %454 = vmatprep.mubr.bf16.mxu0 0
    %455 = vmatmul.mubr.bf16.gmra.mrb[0].mxu0 %v285
    %v456 = vpop.f32.mrb[0].mxu0
    %v457 = vadd.f32 %v89, %v456
    %v458 = vpop.f32.mrb[0].mxu0
    %v459 = vpop.f32.mrb[0].mxu0
    %v460 = vadd.f32 %v89, %v459
    %v461 = vpop.f32.mrb[0].mxu0
    %462 = vmatprep.mubr.bf16.mxu0 0
    %463 = vmatmul.mubr.bf16.gmra.mrb[0].mxu0 %v288
    %v464 = vpop.f32.mrb[0].mxu0
    %v465 = vadd.f32 %v89, %v464
    %v466 = vpop.f32.mrb[0].mxu0
    %v467 = vpop.f32.mrb[0].mxu0
    %v468 = vadd.f32 %v89, %v467
    %v469 = vpop.f32.mrb[0].mxu0
    %470 = vmatprep.mubr.bf16.mxu0 0
    %471 = vmatmul.mubr.bf16.gmra.mrb[0].mxu0 %v291
    %v472 = vpop.f32.mrb[0].mxu0
    %v473 = vadd.f32 %v89, %v472
    %v474 = vpop.f32.mrb[0].mxu0
    %v475 = vpop.f32.mrb[0].mxu0
    %v476 = vadd.f32 %v89, %v475
    %v477 = vpop.f32.mrb[0].mxu0
    %478 = vmatprep.mubr.bf16.mxu0 0
    %479 = vmatmul.mubr.bf16.gmra.mrb[0].mxu0 %v294
    %v480 = vpop.f32.mrb[0].mxu0
    %v481 = vadd.f32 %v89, %v480
    %v482 = vpop.f32.mrb[0].mxu0
    %v483 = vpop.f32.mrb[0].mxu0
    %v484 = vadd.f32 %v89, %v483
    %v485 = vpop.f32.mrb[0].mxu0
    %486 = vmatprep.mubr.bf16.mxu0 0
    %487 = vmatmul.mubr.bf16.gmra.mrb[0].mxu0 %v297
    %v488 = vpop.f32.mrb[0].mxu0
    %v489 = vadd.f32 %v89, %v488
    %v490 = vpop.f32.mrb[0].mxu0
    %v491 = vpop.f32.mrb[0].mxu0
    %v492 = vadd.f32 %v89, %v491
    %v493 = vpop.f32.mrb[0].mxu0
    %494 = vmatprep.mubr.bf16.mxu0 0
    %495 = vmatmul.mubr.bf16.gmra.mrb[0].mxu0 %v300
    %v496 = vpop.f32.mrb[0].mxu0
    %v497 = vadd.f32 %v89, %v496
    %v498 = vpop.f32.mrb[0].mxu0
    %v499 = vpop.f32.mrb[0].mxu0
    %v500 = vadd.f32 %v89, %v499
    %v501 = vpop.f32.mrb[0].mxu0
    %502 = vmatprep.mubr.bf16.mxu0 0
    %503 = vmatmul.mubr.bf16.gmra.mrb[0].mxu0 %v303
    %v504 = vpop.f32.mrb[0].mxu0
    %v505 = vadd.f32 %v89, %v504
    %v506 = vpop.f32.mrb[0].mxu0
    %v507 = vpop.f32.mrb[0].mxu0
    %v508 = vadd.f32 %v89, %v507
    %v509 = vpop.f32.mrb[0].mxu0
    %510 = vmatprep.mubr.bf16.mxu0 0
    %511 = vmatmul.mubr.bf16.gmra.mrb[0].mxu0 %v306
    %v512 = vpop.f32.mrb[0].mxu0
    %v513 = vadd.f32 %v89, %v512
    %v514 = vpop.f32.mrb[0].mxu0
    %v515 = vpop.f32.mrb[0].mxu0
    %v516 = vadd.f32 %v89, %v515
    %v517 = vpop.f32.mrb[0].mxu0
    %518 = vmatprep.mubr.bf16.mxu0 0
    %519 = vmatmul.mubr.bf16.gmra.mrb[0].mxu0 %v309
    %v520 = vpop.f32.mrb[0].mxu0
    %v521 = vadd.f32 %v89, %v520
    %v522 = vpop.f32.mrb[0].mxu0
    %v523 = vpop.f32.mrb[0].mxu0
    %v524 = vadd.f32 %v89, %v523
    %v525 = vpop.f32.mrb[0].mxu0
    %526 = vmatprep.mubr.bf16.mxu0 0
    %527 = vmatmul.mubr.bf16.gmra.mrb[0].mxu0 %v312
    %v528 = vpop.f32.mrb[0].mxu0
    %v529 = vadd.f32 %v89, %v528
    %v530 = vpop.f32.mrb[0].mxu0
    %v531 = vpop.f32.mrb[0].mxu0
    %v532 = vadd.f32 %v89, %v531
    %v533 = vpop.f32.mrb[0].mxu0
    %534 = vmatprep.mubr.bf16.mxu0 0
    %535 = vmatmul.mubr.bf16.gmra.mrb[0].mxu0 %v315
    %v536 = vpop.f32.mrb[0].mxu0
    %v537 = vadd.f32 %v89, %v536
    %v538 = vpop.f32.mrb[0].mxu0
    %v539 = vpop.f32.mrb[0].mxu0
    %v540 = vadd.f32 %v89, %v539
    %v541 = vpop.f32.mrb[0].mxu0
    %542 = vmatprep.mubr.bf16.mxu0 0
    %543 = vmatmul.mubr.bf16.gmra.mrb[0].mxu0 %v318
    %v544 = vpop.f32.mrb[0].mxu0
    %v545 = vadd.f32 %v89, %v544
    %v546 = vpop.f32.mrb[0].mxu0
    %v547 = vpop.f32.mrb[0].mxu0
    %v548 = vadd.f32 %v89, %v547
    %v549 = vpop.f32.mrb[0].mxu0
    %550 = vmatprep.mubr.bf16.mxu0 0
    %551 = vmatmul.mubr.bf16.gmra.mrb[0].mxu0 %v321
    %v552 = vpop.f32.mrb[0].mxu0
    %v553 = vadd.f32 %v89, %v552
    %v554 = vpop.f32.mrb[0].mxu0
    %v555 = vpop.f32.mrb[0].mxu0
    %v556 = vadd.f32 %v89, %v555
    %v557 = vpop.f32.mrb[0].mxu0
    %558 = vmatprep.mubr.bf16.mxu0 0
    %559 = vmatmul.mubr.bf16.gmra.mrb[0].mxu0 %v324
    %v560 = vpop.f32.mrb[0].mxu0
    %v561 = vadd.f32 %v89, %v560
    %v562 = vpop.f32.mrb[0].mxu0
    %v563 = vpop.f32.mrb[0].mxu0
    %v564 = vadd.f32 %v89, %v563
    %v565 = vpop.f32.mrb[0].mxu0
    %566 = vmatprep.mubr.bf16.mxu0 0
    %567 = vmatmul.mubr.bf16.gmra.mrb[0].mxu0 %v327
    %v568 = vpop.f32.mrb[0].mxu0
    %v569 = vadd.f32 %v89, %v568
    %v570 = vpop.f32.mrb[0].mxu0
    %v571 = vpop.f32.mrb[0].mxu0
    %v572 = vadd.f32 %v89, %v571
    %v573 = vpop.f32.mrb[0].mxu0
    %574 = vmatprep.mubr.bf16.mxu0 0
    %575 = vmatmul.mubr.bf16.gmra.mrb[0].mxu0 %v330
    %v576 = vpop.f32.mrb[0].mxu0
    %v577 = vadd.f32 %v89, %v576
    %v578 = vpop.f32.mrb[0].mxu0
    %v579 = vpop.f32.mrb[0].mxu0
    %v580 = vadd.f32 %v89, %v579
    %v581 = vpop.f32.mrb[0].mxu0
    %582 = vmatprep.mubr.bf16.mxu0 0
    %583 = vmatmul.mubr.bf16.gmra.mrb[0].mxu0 %v333
    %v584 = vpop.f32.mrb[0].mxu0
    %v585 = vadd.f32 %v89, %v584
    %v586 = vpop.f32.mrb[0].mxu0
    %v587 = vpop.f32.mrb[0].mxu0
    %v588 = vadd.f32 %v89, %v587
    %v589 = vpop.f32.mrb[0].mxu0
    %590 = vmatprep.mubr.bf16.mxu0 0
    %591 = vmatmul.mubr.bf16.gmra.mrb[0].mxu0 %v336
    %v592 = vpop.f32.mrb[0].mxu0
    %v593 = vadd.f32 %v89, %v592
    %v594 = vpop.f32.mrb[0].mxu0
    %v595 = vpop.f32.mrb[0].mxu0
    %v596 = vadd.f32 %v89, %v595
    %v597 = vpop.f32.mrb[0].mxu0
    %598 = vmatprep.mubr.bf16.mxu0 0
    %599 = vmatmul.mubr.bf16.gmra.mrb[0].mxu0 %v339
    %v600 = vpop.f32.mrb[0].mxu0
    %v601 = vadd.f32 %v89, %v600
    %v602 = vpop.f32.mrb[0].mxu0
    %v603 = vpop.f32.mrb[0].mxu0
    %v604 = vadd.f32 %v89, %v603
    %v605 = vpop.f32.mrb[0].mxu0
    %606 = vmatprep.mubr.bf16.mxu0 0
    %607 = vmatmul.mubr.bf16.gmra.mrb[0].mxu0 %v342
    %v608 = vpop.f32.mrb[0].mxu0
    %v609 = vadd.f32 %v89, %v608
    %v610 = vpop.f32.mrb[0].mxu0
    %v611 = vpop.f32.mrb[0].mxu0
    %v612 = vadd.f32 %v89, %v611
    %v613 = vpop.f32.mrb[0].mxu0
    %614 = vmatprep.mubr.bf16.mxu0 0
    %615 = vmatmul.mubr.bf16.gmra.mrb[0].mxu0 %v345
    %v616 = vpop.f32.mrb[0].mxu0
    %v617 = vadd.f32 %v89, %v616
    %v618 = vpop.f32.mrb[0].mxu0
    %v619 = vpop.f32.mrb[0].mxu0
    %v620 = vadd.f32 %v89, %v619
    %v621 = vpop.f32.mrb[0].mxu0
    %622 = vmatprep.mubr.bf16.mxu0 0
    %623 = vmatmul.mubr.bf16.gmra.mrb[0].mxu0 %v348
    %v624 = vpop.f32.mrb[0].mxu0
    %v625 = vadd.f32 %v89, %v624
    %v626 = vpop.f32.mrb[0].mxu0
    %v627 = vpop.f32.mrb[0].mxu0
    %v628 = vadd.f32 %v89, %v627
    %v629 = vpop.f32.mrb[0].mxu0
    %630 = vmatprep.mubr.bf16.mxu0 0
    %631 = vmatmul.mubr.bf16.gmra.mrb[0].mxu0 %v351
    %v632 = vpop.f32.mrb[0].mxu0
    %v633 = vadd.f32 %v89, %v632
    %v634 = vpop.f32.mrb[0].mxu0
    %v635 = vpop.f32.mrb[0].mxu0
    %v636 = vadd.f32 %v89, %v635
    %v637 = vpop.f32.mrb[0].mxu0
    %638 = vmatprep.mubr.bf16.mxu0 0
    %639 = vmatmul.mubr.bf16.gmra.mrb[0].mxu0 %v354
    %v640 = vpop.f32.mrb[0].mxu0
    %v641 = vadd.f32 %v89, %v640
    %v642 = vpop.f32.mrb[0].mxu0
    %v643 = vpop.f32.mrb[0].mxu0
    %v644 = vadd.f32 %v89, %v643
    %v645 = vpop.f32.mrb[0].mxu0
    %646 = vmatprep.mubr.bf16.mxu0 0
    %647 = vmatmul.mubr.bf16.gmra.mrb[0].mxu0 %v357
    %v648 = vpop.f32.mrb[0].mxu0
    %v649 = vadd.f32 %v89, %v648
    %v650 = vpop.f32.mrb[0].mxu0
    %v651 = vpop.f32.mrb[0].mxu0
    %v652 = vadd.f32 %v89, %v651
    %v653 = vpop.f32.mrb[0].mxu0
    %654 = vdwg.mxu0
    %v655 = vxor.u32 %v401, 2147483648
    %v656 = vxor.u32 %v404, 2147483648
    %v657 = vxor.u32 %v409, 2147483648
    %v658 = vxor.u32 %v412, 2147483648
    %v659 = vxor.u32 %v417, 2147483648
    %v660 = vxor.u32 %v420, 2147483648
    %v661 = vxor.u32 %v425, 2147483648
    %v662 = vxor.u32 %v428, 2147483648
    %v663 = vxor.u32 %v433, 2147483648
    %v664 = vxor.u32 %v436, 2147483648
    %v665 = vxor.u32 %v441, 2147483648
    %v666 = vxor.u32 %v444, 2147483648
    %v667 = vxor.u32 %v449, 2147483648
    %v668 = vxor.u32 %v452, 2147483648
    %v669 = vxor.u32 %v457, 2147483648
    %v670 = vxor.u32 %v460, 2147483648
    %v671 = vxor.u32 %v465, 2147483648
    %v672 = vxor.u32 %v468, 2147483648
    %v673 = vxor.u32 %v473, 2147483648
    %v674 = vxor.u32 %v476, 2147483648
    %v675 = vxor.u32 %v481, 2147483648
    %v676 = vxor.u32 %v484, 2147483648
    %v677 = vxor.u32 %v489, 2147483648
    %v678 = vxor.u32 %v492, 2147483648
    %v679 = vxor.u32 %v497, 2147483648
    %v680 = vxor.u32 %v500, 2147483648
    %v681 = vxor.u32 %v505, 2147483648
    %v682 = vxor.u32 %v508, 2147483648
    %v683 = vxor.u32 %v513, 2147483648
    %v684 = vxor.u32 %v516, 2147483648
    %v685 = vxor.u32 %v521, 2147483648
    %v686 = vxor.u32 %v524, 2147483648
    %v687 = vxor.u32 %v529, 2147483648
    %v688 = vxor.u32 %v532, 2147483648
    %v689 = vxor.u32 %v537, 2147483648
    %v690 = vxor.u32 %v540, 2147483648
    %v691 = vxor.u32 %v545, 2147483648
    %v692 = vxor.u32 %v548, 2147483648
    %v693 = vxor.u32 %v553, 2147483648
    %v694 = vxor.u32 %v556, 2147483648
    %v695 = vxor.u32 %v561, 2147483648
    %v696 = vxor.u32 %v564, 2147483648
    %v697 = vxor.u32 %v569, 2147483648
    %v698 = vxor.u32 %v572, 2147483648
    %v699 = vxor.u32 %v577, 2147483648
    %v700 = vxor.u32 %v580, 2147483648
    %v701 = vxor.u32 %v585, 2147483648
    %v702 = vxor.u32 %v588, 2147483648
    %v703 = vxor.u32 %v593, 2147483648
    %v704 = vxor.u32 %v596, 2147483648
    %v705 = vxor.u32 %v601, 2147483648
    %v706 = vxor.u32 %v604, 2147483648
    %v707 = vxor.u32 %v609, 2147483648
    %v708 = vxor.u32 %v612, 2147483648
    %v709 = vxor.u32 %v617, 2147483648
    %v710 = vxor.u32 %v620, 2147483648
    %v711 = vxor.u32 %v625, 2147483648
    %v712 = vxor.u32 %v628, 2147483648
    %v713 = vxor.u32 %v633, 2147483648
    %v714 = vxor.u32 %v636, 2147483648
    %v715 = vxor.u32 %v641, 2147483648
    %v716 = vxor.u32 %v644, 2147483648
    %v717 = vxor.u32 %v649, 2147483648
    %v718 = vxor.u32 %v652, 2147483648
    %v719 = vmul.f32 %v655, 1.442695
    %v720 = vpow.pop %v719
    %v721 = vmul.f32 %v656, 1.442695
    %v722 = vpow.pop %v721
    %v723 = vmul.f32 %v657, 1.442695
    %v724 = vpow.pop %v723
    %v725 = vmul.f32 %v658, 1.442695
    %v726 = vpow.pop %v725
    %v727 = vmul.f32 %v659, 1.442695
    %v728 = vpow.pop %v727
    %v729 = vmul.f32 %v660, 1.442695
    %v730 = vpow.pop %v729
    %v731 = vmul.f32 %v661, 1.442695
    %v732 = vpow.pop %v731
    %v733 = vmul.f32 %v662, 1.442695
    %v734 = vpow.pop %v733
    %v735 = vmul.f32 %v663, 1.442695
    %v736 = vpow.pop %v735
    %v737 = vmul.f32 %v664, 1.442695
    %v738 = vpow.pop %v737
    %v739 = vmul.f32 %v665, 1.442695
    %v740 = vpow.pop %v739
    %v741 = vmul.f32 %v666, 1.442695
    %v742 = vpow.pop %v741
    %v743 = vmul.f32 %v667, 1.442695
    %v744 = vpow.pop %v743
    %v745 = vmul.f32 %v668, 1.442695
    %v746 = vpow.pop %v745
    %v747 = vmul.f32 %v669, 1.442695
    %v748 = vpow.pop %v747
    %v749 = vmul.f32 %v670, 1.442695
    %v750 = vpow.pop %v749
    %v751 = vmul.f32 %v671, 1.442695
    %v752 = vpow.pop %v751
    %v753 = vmul.f32 %v672, 1.442695
    %v754 = vpow.pop %v753
    %v755 = vmul.f32 %v673, 1.442695
    %v756 = vpow.pop %v755
    %v757 = vmul.f32 %v674, 1.442695
    %v758 = vpow.pop %v757
    %v759 = vmul.f32 %v675, 1.442695
    %v760 = vpow.pop %v759
    %v761 = vmul.f32 %v676, 1.442695
    %v762 = vpow.pop %v761
    %v763 = vmul.f32 %v677, 1.442695
    %v764 = vpow.pop %v763
    %v765 = vmul.f32 %v678, 1.442695
    %v766 = vpow.pop %v765
    %v767 = vmul.f32 %v679, 1.442695
    %v768 = vpow.pop %v767
    %v769 = vmul.f32 %v680, 1.442695
    %v770 = vpow.pop %v769
    %v771 = vmul.f32 %v681, 1.442695
    %v772 = vpow.pop %v771
    %v773 = vmul.f32 %v682, 1.442695
    %v774 = vpow.pop %v773
    %v775 = vmul.f32 %v683, 1.442695
    %v776 = vpow.pop %v775
    %v777 = vmul.f32 %v684, 1.442695
    %v778 = vpow.pop %v777
    %v779 = vmul.f32 %v685, 1.442695
    %v780 = vpow.pop %v779
    %v781 = vmul.f32 %v686, 1.442695
    %v782 = vpow.pop %v781
    %v783 = vmul.f32 %v687, 1.442695
    %v784 = vpow.pop %v783
    %v785 = vmul.f32 %v688, 1.442695
    %v786 = vpow.pop %v785
    %v787 = vmul.f32 %v689, 1.442695
    %v788 = vpow.pop %v787
    %v789 = vmul.f32 %v690, 1.442695
    %v790 = vpow.pop %v789
    %v791 = vmul.f32 %v691, 1.442695
    %v792 = vpow.pop %v791
    %v793 = vmul.f32 %v692, 1.442695
    %v794 = vpow.pop %v793
    %v795 = vmul.f32 %v693, 1.442695
    %v796 = vpow.pop %v795
    %v797 = vmul.f32 %v694, 1.442695
    %v798 = vpow.pop %v797
    %v799 = vmul.f32 %v695, 1.442695
    %v800 = vpow.pop %v799
    %v801 = vmul.f32 %v696, 1.442695
    %v802 = vpow.pop %v801
    %v803 = vmul.f32 %v697, 1.442695
    %v804 = vpow.pop %v803
    %v805 = vmul.f32 %v698, 1.442695
    %v806 = vpow.pop %v805
    %v807 = vmul.f32 %v699, 1.442695
    %v808 = vpow.pop %v807
    %v809 = vmul.f32 %v700, 1.442695
    %v810 = vpow.pop %v809
    %v811 = vmul.f32 %v701, 1.442695
    %v812 = vpow.pop %v811
    %v813 = vmul.f32 %v702, 1.442695
    %v814 = vpow.pop %v813
    %v815 = vmul.f32 %v703, 1.442695
    %v816 = vpow.pop %v815
    %v817 = vmul.f32 %v704, 1.442695
    %v818 = vpow.pop %v817
    %v819 = vmul.f32 %v705, 1.442695
    %v820 = vpow.pop %v819
    %v821 = vmul.f32 %v706, 1.442695
    %v822 = vpow.pop %v821
    %v823 = vmul.f32 %v707, 1.442695
    %v824 = vpow.pop %v823
    %v825 = vmul.f32 %v708, 1.442695
    %v826 = vpow.pop %v825
    %v827 = vmul.f32 %v709, 1.442695
    %v828 = vpow.pop %v827
    %v829 = vmul.f32 %v710, 1.442695
    %v830 = vpow.pop %v829
    %v831 = vmul.f32 %v711, 1.442695
    %v832 = vpow.pop %v831
    %v833 = vmul.f32 %v712, 1.442695
    %v834 = vpow.pop %v833
    %v835 = vmul.f32 %v713, 1.442695
    %v836 = vpow.pop %v835
    %v837 = vmul.f32 %v714, 1.442695
    %v838 = vpow.pop %v837
    %v839 = vmul.f32 %v715, 1.442695
    %v840 = vpow.pop %v839
    %v841 = vmul.f32 %v716, 1.442695
    %v842 = vpow.pop %v841
    %v843 = vmul.f32 %v717, 1.442695
    %v844 = vpow.pop %v843
    %v845 = vmul.f32 %v718, 1.442695
    %v846 = vpow.pop %v845
    %v847 = vadd.f32 %v720, 1.0
    %v848 = vadd.f32 %v722, 1.0
    %v849 = vadd.f32 %v724, 1.0
    %v850 = vadd.f32 %v726, 1.0
    %v851 = vadd.f32 %v728, 1.0
    %v852 = vadd.f32 %v730, 1.0
    %v853 = vadd.f32 %v732, 1.0
    %v854 = vadd.f32 %v734, 1.0
    %v855 = vadd.f32 %v736, 1.0
    %v856 = vadd.f32 %v738, 1.0
    %v857 = vadd.f32 %v740, 1.0
    %v858 = vadd.f32 %v742, 1.0
    %v859 = vadd.f32 %v744, 1.0
    %v860 = vadd.f32 %v746, 1.0
    %v861 = vadd.f32 %v748, 1.0
    %v862 = vadd.f32 %v750, 1.0
    %v863 = vadd.f32 %v752, 1.0
    %v864 = vadd.f32 %v754, 1.0
    %v865 = vadd.f32 %v756, 1.0
    %v866 = vadd.f32 %v758, 1.0
    %v867 = vadd.f32 %v760, 1.0
    %v868 = vadd.f32 %v762, 1.0
    %v869 = vadd.f32 %v764, 1.0
    %v870 = vadd.f32 %v766, 1.0
    %v871 = vadd.f32 %v768, 1.0
    %v872 = vadd.f32 %v770, 1.0
    %v873 = vadd.f32 %v772, 1.0
    %v874 = vadd.f32 %v774, 1.0
    %v875 = vadd.f32 %v776, 1.0
    %v876 = vadd.f32 %v778, 1.0
    %v877 = vadd.f32 %v780, 1.0
    %v878 = vadd.f32 %v782, 1.0
    %v879 = vadd.f32 %v784, 1.0
    %v880 = vadd.f32 %v786, 1.0
    %v881 = vadd.f32 %v788, 1.0
    %v882 = vadd.f32 %v790, 1.0
    %v883 = vadd.f32 %v792, 1.0
    %v884 = vadd.f32 %v794, 1.0
    %v885 = vadd.f32 %v796, 1.0
    %v886 = vadd.f32 %v798, 1.0
    %v887 = vadd.f32 %v800, 1.0
    %v888 = vadd.f32 %v802, 1.0
    %v889 = vadd.f32 %v804, 1.0
    %v890 = vadd.f32 %v806, 1.0
    %v891 = vadd.f32 %v808, 1.0
    %v892 = vadd.f32 %v810, 1.0
    %v893 = vadd.f32 %v812, 1.0
    %v894 = vadd.f32 %v814, 1.0
    %v895 = vadd.f32 %v816, 1.0
    %v896 = vadd.f32 %v818, 1.0
    %v897 = vadd.f32 %v820, 1.0
    %v898 = vadd.f32 %v822, 1.0
    %v899 = vadd.f32 %v824, 1.0
    %v900 = vadd.f32 %v826, 1.0
    %v901 = vadd.f32 %v828, 1.0
    %v902 = vadd.f32 %v830, 1.0
    %v903 = vadd.f32 %v832, 1.0
    %v904 = vadd.f32 %v834, 1.0
    %v905 = vadd.f32 %v836, 1.0
    %v906 = vadd.f32 %v838, 1.0
    %v907 = vadd.f32 %v840, 1.0
    %v908 = vadd.f32 %v842, 1.0
    %v909 = vadd.f32 %v844, 1.0
    %v910 = vadd.f32 %v846, 1.0
    %v911 = vrcp.pop %v847
    %v912 = vmul.f32 1.0, %v911
    %v913 = vrcp.pop %v848
    %v914 = vmul.f32 1.0, %v913
    %v915 = vrcp.pop %v849
    %v916 = vmul.f32 1.0, %v915
    %v917 = vrcp.pop %v850
    %v918 = vmul.f32 1.0, %v917
    %v919 = vrcp.pop %v851
    %v920 = vmul.f32 1.0, %v919
    %v921 = vrcp.pop %v852
    %v922 = vmul.f32 1.0, %v921
    %v923 = vrcp.pop %v853
    %v924 = vmul.f32 1.0, %v923
    %v925 = vrcp.pop %v854
    %v926 = vmul.f32 1.0, %v925
    %v927 = vrcp.pop %v855
    %v928 = vmul.f32 1.0, %v927
    %v929 = vrcp.pop %v856
    %v930 = vmul.f32 1.0, %v929
    %v931 = vrcp.pop %v857
    %v932 = vmul.f32 1.0, %v931
    %v933 = vrcp.pop %v858
    %v934 = vmul.f32 1.0, %v933
    %v935 = vrcp.pop %v859
    %v936 = vmul.f32 1.0, %v935
    %v937 = vrcp.pop %v860
    %v938 = vmul.f32 1.0, %v937
    %v939 = vrcp.pop %v861
    %v940 = vmul.f32 1.0, %v939
    %v941 = vrcp.pop %v862
    %v942 = vmul.f32 1.0, %v941
    %v943 = vrcp.pop %v863
    %v944 = vmul.f32 1.0, %v943
    %v945 = vrcp.pop %v864
    %v946 = vmul.f32 1.0, %v945
    %v947 = vrcp.pop %v865
    %v948 = vmul.f32 1.0, %v947
    %v949 = vrcp.pop %v866
    %v950 = vmul.f32 1.0, %v949
    %v951 = vrcp.pop %v867
    %v952 = vmul.f32 1.0, %v951
    %v953 = vrcp.pop %v868
    %v954 = vmul.f32 1.0, %v953
    %v955 = vrcp.pop %v869
    %v956 = vmul.f32 1.0, %v955
    %v957 = vrcp.pop %v870
    %v958 = vmul.f32 1.0, %v957
    %v959 = vrcp.pop %v871
    %v960 = vmul.f32 1.0, %v959
    %v961 = vrcp.pop %v872
    %v962 = vmul.f32 1.0, %v961
    %v963 = vrcp.pop %v873
    %v964 = vmul.f32 1.0, %v963
    %v965 = vrcp.pop %v874
    %v966 = vmul.f32 1.0, %v965
    %v967 = vrcp.pop %v875
    %v968 = vmul.f32 1.0, %v967
    %v969 = vrcp.pop %v876
    %v970 = vmul.f32 1.0, %v969
    %v971 = vrcp.pop %v877
    %v972 = vmul.f32 1.0, %v971
    %v973 = vrcp.pop %v878
    %v974 = vmul.f32 1.0, %v973
    %v975 = vrcp.pop %v879
    %v976 = vmul.f32 1.0, %v975
    %v977 = vrcp.pop %v880
    %v978 = vmul.f32 1.0, %v977
    %v979 = vrcp.pop %v881
    %v980 = vmul.f32 1.0, %v979
    %v981 = vrcp.pop %v882
    %v982 = vmul.f32 1.0, %v981
    %v983 = vrcp.pop %v883
    %v984 = vmul.f32 1.0, %v983
    %v985 = vrcp.pop %v884
    %v986 = vmul.f32 1.0, %v985
    %v987 = vrcp.pop %v885
    %v988 = vmul.f32 1.0, %v987
    %v989 = vrcp.pop %v886
    %v990 = vmul.f32 1.0, %v989
    %v991 = vrcp.pop %v887
    %v992 = vmul.f32 1.0, %v991
    %v993 = vrcp.pop %v888
    %v994 = vmul.f32 1.0, %v993
    %v995 = vrcp.pop %v889
    %v996 = vmul.f32 1.0, %v995
    %v997 = vrcp.pop %v890
    %v998 = vmul.f32 1.0, %v997
    %v999 = vrcp.pop %v891
    %v1000 = vmul.f32 1.0, %v999
    %v1001 = vrcp.pop %v892
    %v1002 = vmul.f32 1.0, %v1001
    %v1003 = vrcp.pop %v893
    %v1004 = vmul.f32 1.0, %v1003
    %v1005 = vrcp.pop %v894
    %v1006 = vmul.f32 1.0, %v1005
    %v1007 = vrcp.pop %v895
    %v1008 = vmul.f32 1.0, %v1007
    %v1009 = vrcp.pop %v896
    %v1010 = vmul.f32 1.0, %v1009
    %v1011 = vrcp.pop %v897
    %v1012 = vmul.f32 1.0, %v1011
    %v1013 = vrcp.pop %v898
    %v1014 = vmul.f32 1.0, %v1013
    %v1015 = vrcp.pop %v899
    %v1016 = vmul.f32 1.0, %v1015
    %v1017 = vrcp.pop %v900
    %v1018 = vmul.f32 1.0, %v1017
    %v1019 = vrcp.pop %v901
    %v1020 = vmul.f32 1.0, %v1019
    %v1021 = vrcp.pop %v902
    %v1022 = vmul.f32 1.0, %v1021
    %v1023 = vrcp.pop %v903
    %v1024 = vmul.f32 1.0, %v1023
    %v1025 = vrcp.pop %v904
    %v1026 = vmul.f32 1.0, %v1025
    %v1027 = vrcp.pop %v905
    %v1028 = vmul.f32 1.0, %v1027
    %v1029 = vrcp.pop %v906
    %v1030 = vmul.f32 1.0, %v1029
    %v1031 = vrcp.pop %v907
    %v1032 = vmul.f32 1.0, %v1031
    %v1033 = vrcp.pop %v908
    %v1034 = vmul.f32 1.0, %v1033
    %v1035 = vrcp.pop %v909
    %v1036 = vmul.f32 1.0, %v1035
    %v1037 = vrcp.pop %v910
    %v1038 = vmul.f32 1.0, %v1037
    %v1039 = vmul.f32 %v401, %v912
    %v1040 = vmul.f32 %v404, %v914
    %v1041 = vmul.f32 %v409, %v916
    %v1042 = vmul.f32 %v412, %v918
    %v1043 = vmul.f32 %v417, %v920
    %v1044 = vmul.f32 %v420, %v922
    %v1045 = vmul.f32 %v425, %v924
    %v1046 = vmul.f32 %v428, %v926
    %v1047 = vmul.f32 %v433, %v928
    %v1048 = vmul.f32 %v436, %v930
    %v1049 = vmul.f32 %v441, %v932
    %v1050 = vmul.f32 %v444, %v934
    %v1051 = vmul.f32 %v449, %v936
    %v1052 = vmul.f32 %v452, %v938
    %v1053 = vmul.f32 %v457, %v940
    %v1054 = vmul.f32 %v460, %v942
    %v1055 = vmul.f32 %v465, %v944
    %v1056 = vmul.f32 %v468, %v946
    %v1057 = vmul.f32 %v473, %v948
    %v1058 = vmul.f32 %v476, %v950
    %v1059 = vmul.f32 %v481, %v952
    %v1060 = vmul.f32 %v484, %v954
    %v1061 = vmul.f32 %v489, %v956
    %v1062 = vmul.f32 %v492, %v958
    %v1063 = vmul.f32 %v497, %v960
    %v1064 = vmul.f32 %v500, %v962
    %v1065 = vmul.f32 %v505, %v964
    %v1066 = vmul.f32 %v508, %v966
    %v1067 = vmul.f32 %v513, %v968
    %v1068 = vmul.f32 %v516, %v970
    %v1069 = vmul.f32 %v521, %v972
    %v1070 = vmul.f32 %v524, %v974
    %v1071 = vmul.f32 %v529, %v976
    %v1072 = vmul.f32 %v532, %v978
    %v1073 = vmul.f32 %v537, %v980
    %v1074 = vmul.f32 %v540, %v982
    %v1075 = vmul.f32 %v545, %v984
    %v1076 = vmul.f32 %v548, %v986
    %v1077 = vmul.f32 %v553, %v988
    %v1078 = vmul.f32 %v556, %v990
    %v1079 = vmul.f32 %v561, %v992
    %v1080 = vmul.f32 %v564, %v994
    %v1081 = vmul.f32 %v569, %v996
    %v1082 = vmul.f32 %v572, %v998
    %v1083 = vmul.f32 %v577, %v1000
    %v1084 = vmul.f32 %v580, %v1002
    %v1085 = vmul.f32 %v585, %v1004
    %v1086 = vmul.f32 %v588, %v1006
    %v1087 = vmul.f32 %v593, %v1008
    %v1088 = vmul.f32 %v596, %v1010
    %v1089 = vmul.f32 %v601, %v1012
    %v1090 = vmul.f32 %v604, %v1014
    %v1091 = vmul.f32 %v609, %v1016
    %v1092 = vmul.f32 %v612, %v1018
    %v1093 = vmul.f32 %v617, %v1020
    %v1094 = vmul.f32 %v620, %v1022
    %v1095 = vmul.f32 %v625, %v1024
    %v1096 = vmul.f32 %v628, %v1026
    %v1097 = vmul.f32 %v633, %v1028
    %v1098 = vmul.f32 %v636, %v1030
    %v1099 = vmul.f32 %v641, %v1032
    %v1100 = vmul.f32 %v644, %v1034
    %v1101 = vmul.f32 %v649, %v1036
    %v1102 = vmul.f32 %v652, %v1038
    %v1103 = vpack.c.bf16 %v1040, %v1039
    %v1104 = vpack.c.bf16 %v1042, %v1041
    %v1105 = vpack.c.bf16 %v1044, %v1043
    %v1106 = vpack.c.bf16 %v1046, %v1045
    %v1107 = vpack.c.bf16 %v1048, %v1047
    %v1108 = vpack.c.bf16 %v1050, %v1049
    %v1109 = vpack.c.bf16 %v1052, %v1051
    %v1110 = vpack.c.bf16 %v1054, %v1053
    %v1111 = vpack.c.bf16 %v1056, %v1055
    %v1112 = vpack.c.bf16 %v1058, %v1057
    %v1113 = vpack.c.bf16 %v1060, %v1059
    %v1114 = vpack.c.bf16 %v1062, %v1061
    %v1115 = vpack.c.bf16 %v1064, %v1063
    %v1116 = vpack.c.bf16 %v1066, %v1065
    %v1117 = vpack.c.bf16 %v1068, %v1067
    %v1118 = vpack.c.bf16 %v1070, %v1069
    %v1119 = vpack.c.bf16 %v1072, %v1071
    %v1120 = vpack.c.bf16 %v1074, %v1073
    %v1121 = vpack.c.bf16 %v1076, %v1075
    %v1122 = vpack.c.bf16 %v1078, %v1077
    %v1123 = vpack.c.bf16 %v1080, %v1079
    %v1124 = vpack.c.bf16 %v1082, %v1081
    %v1125 = vpack.c.bf16 %v1084, %v1083
    %v1126 = vpack.c.bf16 %v1086, %v1085
    %v1127 = vpack.c.bf16 %v1088, %v1087
    %v1128 = vpack.c.bf16 %v1090, %v1089
    %v1129 = vpack.c.bf16 %v1092, %v1091
    %v1130 = vpack.c.bf16 %v1094, %v1093
    %v1131 = vpack.c.bf16 %v1096, %v1095
    %v1132 = vpack.c.bf16 %v1098, %v1097
    %v1133 = vpack.c.bf16 %v1100, %v1099
    %v1134 = vpack.c.bf16 %v1102, %v1101
    %v1167 = vunpack.c.l.b16 %v1103
    %v1168 = vunpack.c.h.b16 %v1103
    %v1169 = vunpack.c.l.b16 %v1104
    %v1170 = vunpack.c.h.b16 %v1104
    %v1171 = vunpack.c.l.b16 %v1105
    %v1172 = vunpack.c.h.b16 %v1105
    %v1173 = vunpack.c.l.b16 %v1106
    %v1174 = vunpack.c.h.b16 %v1106
    %v1175 = vunpack.c.l.b16 %v1107
    %v1176 = vunpack.c.h.b16 %v1107
    %v1177 = vunpack.c.l.b16 %v1108
    %v1178 = vunpack.c.h.b16 %v1108
    %v1179 = vunpack.c.l.b16 %v1109
    %v1180 = vunpack.c.h.b16 %v1109
    %v1181 = vunpack.c.l.b16 %v1110
    %v1182 = vunpack.c.h.b16 %v1110
    %v1183 = vunpack.c.l.b16 %v1111
    %v1184 = vunpack.c.h.b16 %v1111
    %v1185 = vunpack.c.l.b16 %v1112
    %v1186 = vunpack.c.h.b16 %v1112
    %v1187 = vunpack.c.l.b16 %v1113
    %v1188 = vunpack.c.h.b16 %v1113
    %v1189 = vunpack.c.l.b16 %v1114
    %v1190 = vunpack.c.h.b16 %v1114
    %v1191 = vunpack.c.l.b16 %v1115
    %v1192 = vunpack.c.h.b16 %v1115
    %v1193 = vunpack.c.l.b16 %v1116
    %v1194 = vunpack.c.h.b16 %v1116
    %v1195 = vunpack.c.l.b16 %v1117
    %v1196 = vunpack.c.h.b16 %v1117
    %v1197 = vunpack.c.l.b16 %v1118
    %v1198 = vunpack.c.h.b16 %v1118
    %v1199 = vunpack.c.l.b16 %v1119
    %v1200 = vunpack.c.h.b16 %v1119
    %v1201 = vunpack.c.l.b16 %v1120
    %v1202 = vunpack.c.h.b16 %v1120
    %v1203 = vunpack.c.l.b16 %v1121
    %v1204 = vunpack.c.h.b16 %v1121
    %v1205 = vunpack.c.l.b16 %v1122
    %v1206 = vunpack.c.h.b16 %v1122
    %v1207 = vunpack.c.l.b16 %v1123
    %v1208 = vunpack.c.h.b16 %v1123
    %v1209 = vunpack.c.l.b16 %v1124
    %v1210 = vunpack.c.h.b16 %v1124
    %v1211 = vunpack.c.l.b16 %v1125
    %v1212 = vunpack.c.h.b16 %v1125
    %v1213 = vunpack.c.l.b16 %v1126
    %v1214 = vunpack.c.h.b16 %v1126
    %v1215 = vunpack.c.l.b16 %v1127
    %v1216 = vunpack.c.h.b16 %v1127
    %v1217 = vunpack.c.l.b16 %v1128
    %v1218 = vunpack.c.h.b16 %v1128
    %v1219 = vunpack.c.l.b16 %v1129
    %v1220 = vunpack.c.h.b16 %v1129
    %v1221 = vunpack.c.l.b16 %v1130
    %v1222 = vunpack.c.h.b16 %v1130
    %v1223 = vunpack.c.l.b16 %v1131
    %v1224 = vunpack.c.h.b16 %v1131
    %v1225 = vunpack.c.l.b16 %v1132
    %v1226 = vunpack.c.h.b16 %v1132
    %v1227 = vunpack.c.l.b16 %v1133
    %v1228 = vunpack.c.h.b16 %v1133
    %v1229 = vunpack.c.l.b16 %v1134
    %v1230 = vunpack.c.h.b16 %v1134
    %v1231 = vpack.c.b16 %v1167, %v1167
    %v1232 = vpack.c.b16 %v1168, %v1168
    %v1233 = vpack.c.b16 %v1169, %v1169
    %v1234 = vpack.c.b16 %v1170, %v1170
    %v1235 = vpack.c.b16 %v1171, %v1171
    %v1236 = vpack.c.b16 %v1172, %v1172
    %v1237 = vpack.c.b16 %v1173, %v1173
    %v1238 = vpack.c.b16 %v1174, %v1174
    %v1239 = vpack.c.b16 %v1175, %v1175
    %v1240 = vpack.c.b16 %v1176, %v1176
    %v1241 = vpack.c.b16 %v1177, %v1177
    %v1242 = vpack.c.b16 %v1178, %v1178
    %v1243 = vpack.c.b16 %v1179, %v1179
    %v1244 = vpack.c.b16 %v1180, %v1180
    %v1245 = vpack.c.b16 %v1181, %v1181
    %v1246 = vpack.c.b16 %v1182, %v1182
    %v1247 = vpack.c.b16 %v1183, %v1183
    %v1248 = vpack.c.b16 %v1184, %v1184
    %v1249 = vpack.c.b16 %v1185, %v1185
    %v1250 = vpack.c.b16 %v1186, %v1186
    %v1251 = vpack.c.b16 %v1187, %v1187
    %v1252 = vpack.c.b16 %v1188, %v1188
    %v1253 = vpack.c.b16 %v1189, %v1189
    %v1254 = vpack.c.b16 %v1190, %v1190
    %v1255 = vpack.c.b16 %v1191, %v1191
    %v1256 = vpack.c.b16 %v1192, %v1192
    %v1257 = vpack.c.b16 %v1193, %v1193
    %v1258 = vpack.c.b16 %v1194, %v1194
    %v1259 = vpack.c.b16 %v1195, %v1195
    %v1260 = vpack.c.b16 %v1196, %v1196
    %v1261 = vpack.c.b16 %v1197, %v1197
    %v1262 = vpack.c.b16 %v1198, %v1198
    %v1263 = vpack.c.b16 %v1199, %v1199
    %v1264 = vpack.c.b16 %v1200, %v1200
    %v1265 = vpack.c.b16 %v1201, %v1201
    %v1266 = vpack.c.b16 %v1202, %v1202
    %v1267 = vpack.c.b16 %v1203, %v1203
    %v1268 = vpack.c.b16 %v1204, %v1204
    %v1269 = vpack.c.b16 %v1205, %v1205
    %v1270 = vpack.c.b16 %v1206, %v1206
    %v1271 = vpack.c.b16 %v1207, %v1207
    %v1272 = vpack.c.b16 %v1208, %v1208
    %v1273 = vpack.c.b16 %v1209, %v1209
    %v1274 = vpack.c.b16 %v1210, %v1210
    %v1275 = vpack.c.b16 %v1211, %v1211
    %v1276 = vpack.c.b16 %v1212, %v1212
    %v1277 = vpack.c.b16 %v1213, %v1213
    %v1278 = vpack.c.b16 %v1214, %v1214
    %v1279 = vpack.c.b16 %v1215, %v1215
    %v1280 = vpack.c.b16 %v1216, %v1216
    %v1281 = vpack.c.b16 %v1217, %v1217
    %v1282 = vpack.c.b16 %v1218, %v1218
    %v1283 = vpack.c.b16 %v1219, %v1219
    %v1284 = vpack.c.b16 %v1220, %v1220
    %v1285 = vpack.c.b16 %v1221, %v1221
    %v1286 = vpack.c.b16 %v1222, %v1222
    %v1287 = vpack.c.b16 %v1223, %v1223
    %v1288 = vpack.c.b16 %v1224, %v1224
    %v1289 = vpack.c.b16 %v1225, %v1225
    %v1290 = vpack.c.b16 %v1226, %v1226
    %v1291 = vpack.c.b16 %v1227, %v1227
    %v1292 = vpack.c.b16 %v1228, %v1228
    %v1293 = vpack.c.b16 %v1229, %v1229
    %v1294 = vpack.c.b16 %v1230, %v1230
    %vm1359 = vcmask 257024
    %1360 = vst.msk [vmem:[#allocation2] sm:$0xf] %vm1359, %v1231
    %1361 = vst.msk [vmem:[#allocation2 + $0x4] sm:$0xf] %vm1359, %v1232
    %1362 = vst.msk [vmem:[#allocation2 + $0x8] sm:$0xf] %vm1359, %v1233
    %1363 = vst.msk [vmem:[#allocation2 + $0xc] sm:$0xf] %vm1359, %v1234
    %1364 = vst.msk [vmem:[#allocation2 + $0x10] sm:$0xf] %vm1359, %v1235
    %1365 = vst.msk [vmem:[#allocation2 + $0x14] sm:$0xf] %vm1359, %v1236
    %1366 = vst.msk [vmem:[#allocation2 + $0x18] sm:$0xf] %vm1359, %v1237
    %1367 = vst.msk [vmem:[#allocation2 + $0x1c] sm:$0xf] %vm1359, %v1238
    %1368 = vst.msk [vmem:[#allocation2 + $0x20] sm:$0xf] %vm1359, %v1239
    %1369 = vst.msk [vmem:[#allocation2 + $0x24] sm:$0xf] %vm1359, %v1240
    %1370 = vst.msk [vmem:[#allocation2 + $0x28] sm:$0xf] %vm1359, %v1241
    %1371 = vst.msk [vmem:[#allocation2 + $0x2c] sm:$0xf] %vm1359, %v1242
    %1372 = vst.msk [vmem:[#allocation2 + $0x30] sm:$0xf] %vm1359, %v1243
    %1373 = vst.msk [vmem:[#allocation2 + $0x34] sm:$0xf] %vm1359, %v1244
    %1374 = vst.msk [vmem:[#allocation2 + $0x38] sm:$0xf] %vm1359, %v1245
    %1375 = vst.msk [vmem:[#allocation2 + $0x3c] sm:$0xf] %vm1359, %v1246
    %1376 = vst.msk [vmem:[#allocation2 + $0x40] sm:$0xf] %vm1359, %v1247
    %1377 = vst.msk [vmem:[#allocation2 + $0x44] sm:$0xf] %vm1359, %v1248
    %1378 = vst.msk [vmem:[#allocation2 + $0x48] sm:$0xf] %vm1359, %v1249
    %1379 = vst.msk [vmem:[#allocation2 + $0x4c] sm:$0xf] %vm1359, %v1250
    %1380 = vst.msk [vmem:[#allocation2 + $0x50] sm:$0xf] %vm1359, %v1251
    %1381 = vst.msk [vmem:[#allocation2 + $0x54] sm:$0xf] %vm1359, %v1252
    %1382 = vst.msk [vmem:[#allocation2 + $0x58] sm:$0xf] %vm1359, %v1253
    %1383 = vst.msk [vmem:[#allocation2 + $0x5c] sm:$0xf] %vm1359, %v1254
    %1384 = vst.msk [vmem:[#allocation2 + $0x60] sm:$0xf] %vm1359, %v1255
    %1385 = vst.msk [vmem:[#allocation2 + $0x64] sm:$0xf] %vm1359, %v1256
    %1386 = vst.msk [vmem:[#allocation2 + $0x68] sm:$0xf] %vm1359, %v1257
    %1387 = vst.msk [vmem:[#allocation2 + $0x6c] sm:$0xf] %vm1359, %v1258
    %1388 = vst.msk [vmem:[#allocation2 + $0x70] sm:$0xf] %vm1359, %v1259
    %1389 = vst.msk [vmem:[#allocation2 + $0x74] sm:$0xf] %vm1359, %v1260
    %1390 = vst.msk [vmem:[#allocation2 + $0x78] sm:$0xf] %vm1359, %v1261
    %1391 = vst.msk [vmem:[#allocation2 + $0x7c] sm:$0xf] %vm1359, %v1262
    %1392 = vst.msk [vmem:[#allocation2 + $0x80] sm:$0xf] %vm1359, %v1263
    %1393 = vst.msk [vmem:[#allocation2 + $0x84] sm:$0xf] %vm1359, %v1264
    %1394 = vst.msk [vmem:[#allocation2 + $0x88] sm:$0xf] %vm1359, %v1265
    %1395 = vst.msk [vmem:[#allocation2 + $0x8c] sm:$0xf] %vm1359, %v1266
    %1396 = vst.msk [vmem:[#allocation2 + $0x90] sm:$0xf] %vm1359, %v1267
    %1397 = vst.msk [vmem:[#allocation2 + $0x94] sm:$0xf] %vm1359, %v1268
    %1398 = vst.msk [vmem:[#allocation2 + $0x98] sm:$0xf] %vm1359, %v1269
    %1399 = vst.msk [vmem:[#allocation2 + $0x9c] sm:$0xf] %vm1359, %v1270
    %1400 = vst.msk [vmem:[#allocation2 + $0xa0] sm:$0xf] %vm1359, %v1271
    %1401 = vst.msk [vmem:[#allocation2 + $0xa4] sm:$0xf] %vm1359, %v1272
    %1402 = vst.msk [vmem:[#allocation2 + $0xa8] sm:$0xf] %vm1359, %v1273
    %1403 = vst.msk [vmem:[#allocation2 + $0xac] sm:$0xf] %vm1359, %v1274
    %1404 = vst.msk [vmem:[#allocation2 + $0xb0] sm:$0xf] %vm1359, %v1275
    %1405 = vst.msk [vmem:[#allocation2 + $0xb4] sm:$0xf] %vm1359, %v1276
    %1406 = vst.msk [vmem:[#allocation2 + $0xb8] sm:$0xf] %vm1359, %v1277
    %1407 = vst.msk [vmem:[#allocation2 + $0xbc] sm:$0xf] %vm1359, %v1278
    %1408 = vst.msk [vmem:[#allocation2 + $0xc0] sm:$0xf] %vm1359, %v1279
    %1409 = vst.msk [vmem:[#allocation2 + $0xc4] sm:$0xf] %vm1359, %v1280
    %1410 = vst.msk [vmem:[#allocation2 + $0xc8] sm:$0xf] %vm1359, %v1281
    %1411 = vst.msk [vmem:[#allocation2 + $0xcc] sm:$0xf] %vm1359, %v1282
    %1412 = vst.msk [vmem:[#allocation2 + $0xd0] sm:$0xf] %vm1359, %v1283
    %1413 = vst.msk [vmem:[#allocation2 + $0xd4] sm:$0xf] %vm1359, %v1284
    %1414 = vst.msk [vmem:[#allocation2 + $0xd8] sm:$0xf] %vm1359, %v1285
    %1415 = vst.msk [vmem:[#allocation2 + $0xdc] sm:$0xf] %vm1359, %v1286
    %1416 = vst.msk [vmem:[#allocation2 + $0xe0] sm:$0xf] %vm1359, %v1287
    %1417 = vst.msk [vmem:[#allocation2 + $0xe4] sm:$0xf] %vm1359, %v1288
    %1418 = vst.msk [vmem:[#allocation2 + $0xe8] sm:$0xf] %vm1359, %v1289
    %1419 = vst.msk [vmem:[#allocation2 + $0xec] sm:$0xf] %vm1359, %v1290
    %1420 = vst.msk [vmem:[#allocation2 + $0xf0] sm:$0xf] %vm1359, %v1291
    %1421 = vst.msk [vmem:[#allocation2 + $0xf4] sm:$0xf] %vm1359, %v1292
    %1422 = vst.msk [vmem:[#allocation2 + $0xf8] sm:$0xf] %vm1359, %v1293
    %1423 = vst.msk [vmem:[#allocation2 + $0xfc] sm:$0xf] %vm1359, %v1294
    // Predicated region
    $region14: #{conv2d_bn_silu_im2col.1} parent=1 // pred_check
      _
    $region15: #{conv2d_bn_silu_im2col.1} parent=1 // pred_check_branch
      %1425 = sbr.rel (0) target = $region17
    $region16: #{conv2d_bn_silu_im2col.1} parent=1 // pred_region
      %s1427 = ssub.s32 4096, 4096
      %1428 = vsyncadd [#allocation3], %s1427
      %s1429 = sshll.u32 [#allocation2], 4
      %s1430 = int_to_ptr.vmem [resolvable:$true] %s1429
      %1435 = dma.vmem_to_hbm [thread:$0]  %s1430, 4096, %s3, [#allocation3], 64, 64, 4
    $region17: #{conv2d_bn_silu_im2col.1} parent=1 // pred_fallthru
      _
    // Predicated region
    $region18: #{conv2d_bn_silu_im2col.1} parent=1 // pred_check
      _
    $region19: #{conv2d_bn_silu_im2col.1} parent=1 // pred_check_branch
      %1437 = sbr.rel (0) target = $region21
    $region20: #{conv2d_bn_silu_im2col.1} parent=1 // pred_region
      %1438 = dma.done [#allocation3], 4096
    $region21: #{conv2d_bn_silu_im2col.1} parent=1 // pred_fallthru
      _
    %1439 = vsyncpa [#allocation3], 1

</llo_original>
